<compile_context>
chip_gen: v7x
topology: tpu7x:2x2x1
jax: 0.10.0
libtpu: 0.0.40
codegen_flags: <defaults>
</compile_context>

<pallas_src>
import functools

import jax
import jax.numpy as jnp
from jax.experimental import pallas as pl
from jax.experimental.pallas import tpu as pltpu


# ---------------------------------------------------------------------------
# Kernel bodies
# ---------------------------------------------------------------------------

def _per_row_ce(logits_f32, labels):
    """Per-row CE pieces. Returns (unmasked lse - target_logit, valid mask)."""
    tb, c = logits_f32.shape
    # Numerically-stable logsumexp per row (VPU + EUP + XLU work only).
    row_max = jnp.max(logits_f32, axis=-1, keepdims=True)                  # (TB, 1)
    lse = jnp.log(jnp.sum(jnp.exp(logits_f32 - row_max),
                          axis=-1, keepdims=True)) + row_max               # (TB, 1)
    # Target-logit gather via iota == label mask (no dynamic gather on TPU).
    col = jax.lax.broadcasted_iota(jnp.int32, (tb, c), 1)                  # (TB, C)
    onehot = col == labels                                                 # (TB, C)
    tgt = jnp.sum(jnp.where(onehot, logits_f32, 0.0),
                  axis=-1, keepdims=True)                                  # (TB, 1)
    # ignore_index=-100 (and out-of-range labels) => invalid row.
    valid = (labels >= 0) & (labels < c)                                   # (TB, 1)
    return lse - tgt, valid


def _ce_single_block_kernel(logits_ref, labels_ref, loss_ref):
    """Single-block fast path: full (B, C) in VMEM, final scalar loss in SMEM."""
    raw, valid = _per_row_ce(logits_ref[...].astype(jnp.float32), labels_ref[...])
    per_row = jnp.where(valid, raw, 0.0)
    psum = jnp.sum(per_row)
    cnt = jnp.sum(valid.astype(jnp.float32))
    # NaN on an all-ignored / empty batch, matching torch.nn.CrossEntropyLoss.
    loss_ref[0, 0] = psum / cnt


def _ce_block_kernel(logits_ref, labels_ref, out_ref, *, tb, b):
    """Tiled path: (tb, C) logits block + resident padded labels -> partial sums.

    logits_ref : VMEM (tb, C)      native dtype, upcast in-kernel
    labels_ref : VMEM (b_pad, 1)   int32, resident across the whole grid
    out_ref    : SMEM (1, 2)       [partial_sum, valid_count]
    """
    i = pl.program_id(0)
    logits = logits_ref[...].astype(jnp.float32)

    start = pl.multiple_of(i * tb, tb)
    labels = labels_ref[pl.ds(start, tb), :]                               # (tb, 1)

    raw, valid = _per_row_ce(logits, labels)

    # Boundary block: exclude rows past B so the result never depends on the
    # unspecified contents of the logits block padding (labels are padded with
    # -100 as well; this is belt-and-braces).
    row = jax.lax.broadcasted_iota(jnp.int32, (tb, 1), 0) + i * tb
    valid = valid & (row < b)

    per_row = jnp.where(valid, raw, 0.0)
    out_ref[0, 0] = jnp.sum(per_row)
    out_ref[0, 1] = jnp.sum(valid.astype(jnp.float32))


# ---------------------------------------------------------------------------
# Wrapper
# ---------------------------------------------------------------------------

def _sublane_pack(dtype):
    """Native sublane packing: 8 rows for 32-bit, 16 for bf16, 32 for int8/fp8."""
    itemsize = jnp.dtype(dtype).itemsize
    return max(8, 32 // max(int(itemsize), 1))


def _vmem_block_budget():
    """Per-generation single-buffer logits budget (bytes), plus physical VMEM."""
    default_budget = 6 << 20  # 2x-buffered = 12 MiB: inside v5e's 16-MiB scoped default
    try:
        phys = int(pltpu.get_tpu_info().vmem_capacity_bytes)
    except Exception:
        return default_budget, None
    # phys/8 per buffer: 16 MiB on 128-MiB chips (v5e/v6e), 8 MiB on v7x (64 MiB).
    return max(default_budget, phys // 8), phys


def cross_entropy_pallas(query_logits, target_classes, *, block_rows=None):
    """CrossEntropyLoss(mean, ignore_index=-100) over (B, C) logits.

    query_logits   : (B, C) any float dtype (kept native for the HBM->VMEM DMA)
    target_classes : (B,) integer labels
    """
    b, c = query_logits.shape
    itemsize = int(jnp.dtype(query_logits.dtype).itemsize)
    pack = _sublane_pack(query_logits.dtype)
    budget, phys = _vmem_block_budget()

    labels = target_classes.astype(jnp.int32).reshape(b)

    b_round = ((b + pack - 1) // pack) * pack
    row_bytes = max(c * itemsize, 1)

    if block_rows is not None:
        tb = max(pack, (block_rows // pack) * pack)
        tb = min(tb, b_round)
    elif b_round * row_bytes <= budget:
        tb = b_round                                   # whole batch fits: one block
    else:
        tb = max(pack, (budget // row_bytes) // pack * pack)
        tb = min(tb, b_round)

    num_blocks = pl.cdiv(b, tb)

    cost = pl.CostEstimate(
        flops=5 * b * c,
        transcendentals=b * c,
        bytes_accessed=b * c * itemsize + b * 4 + 8 * num_blocks,
    )

    # Logits are double-buffered by the pipeline; raise the scoped VMEM limit
    # only when the footprint would not fit v5e's 16-MiB default, capped well
    # under physical VMEM (important on v7x's 64 MiB).
    footprint = 2 * tb * row_bytes + b_round * 4 + (1 << 20)
    vmem_limit = None
    if footprint > (14 << 20):
        cap = (phys if phys is not None else (64 << 20)) * 3 // 4
        vmem_limit = int(min(footprint + (2 << 20), cap))

    if num_blocks == 1:
        # --- single-block fast path: no grid, full-array blocks, in-kernel finalize
        labels2d = labels.reshape(b, 1)
        loss = pl.pallas_call(
            _ce_single_block_kernel,
            out_shape=jax.ShapeDtypeStruct((1, 1), jnp.float32),
            in_specs=[
                pl.BlockSpec((b, c), lambda: (0, 0)),
                pl.BlockSpec((b, 1), lambda: (0, 0)),
            ],
            out_specs=pl.BlockSpec((1, 1), lambda: (0, 0), memory_space=pltpu.SMEM),
            compiler_params=pltpu.CompilerParams(vmem_limit_bytes=vmem_limit),
            cost_estimate=cost,
        )(query_logits, labels2d)
        return loss[0, 0]

    # --- tiled path (large B*C): per-block partials, labels resident in VMEM ---
    b_pad = num_blocks * tb
    labels_pad = jnp.pad(labels, (0, b_pad - b),
                         constant_values=-100).reshape(b_pad, 1)

    partials = pl.pallas_call(
        functools.partial(_ce_block_kernel, tb=tb, b=b),
        out_shape=jax.ShapeDtypeStruct((num_blocks, 2), jnp.float32),
        grid=(num_blocks,),
        in_specs=[
            pl.BlockSpec((tb, c), lambda i: (i, 0)),      # logits, native dtype
            pl.BlockSpec((b_pad, 1), lambda i: (0, 0)),   # labels: resident, one DMA
        ],
        out_specs=pl.BlockSpec((1, 2), lambda i: (i, 0), memory_space=pltpu.SMEM),
        compiler_params=pltpu.CompilerParams(
            dimension_semantics=("parallel",),            # >= 2 blocks here by construction
            vmem_limit_bytes=vmem_limit),
        cost_estimate=cost,
    )(query_logits, labels_pad)

    # Tiny final reduction in JAX; divide by TOTAL number of non-ignored rows.
    return jnp.sum(partials[:, 0]) / jnp.sum(partials[:, 1])


# ---------------------------------------------------------------------------
# Module wrapper (mirrors INTR's SetCriterion forward semantics)
# ---------------------------------------------------------------------------

class SetCriterion:
    """JAX/Pallas port of INTR's SetCriterion (CE loss only)."""

    def __init__(self, args=None, model=None):
        self.args = args
        self.model = model

    def get_loss(self, outputs, targets, model=None):
        assert 'query_logits' in outputs
        query_logits = outputs['query_logits']
        # Prefer a pre-stacked label array; fall back to the PyTorch-style
        # list-of-dicts concat.
        if isinstance(targets, dict):
            target_classes = jnp.asarray(targets['image_label'])
        else:
            labels = [jnp.atleast_1d(t['image_label']) for t in targets]
            target_classes = labels[0] if len(labels) == 1 else jnp.concatenate(labels)
        classification_loss = cross_entropy_pallas(query_logits, target_classes)
        return {'CE_loss': classification_loss}

    def forward(self, outputs, targets, model=None):
        losses = {}
        losses.update(self.get_loss(outputs, targets, model))
        return losses

    __call__ = forward


# ---------------------------------------------------------------------------
# Self-test
# ---------------------------------------------------------------------------

if __name__ == "__main__":
    key = jax.random.PRNGKey(0)
    k1, k2, k3, k4 = jax.random.split(key, 4)

    def ref_ce(logits, lbls):
        logits = logits.astype(jnp.float32)
        lse = jax.scipy.special.logsumexp(logits, axis=-1)
        valid = (lbls >= 0) & (lbls < logits.shape[-1])
        safe = jnp.where(valid, lbls, 0)
        tgt = jnp.take_along_axis(logits, safe[:, None], axis=-1)[:, 0]
        per = jnp.where(valid, lse - tgt, 0.0)
        return jnp.sum(per) / jnp.sum(valid)

    # --- Check 1: module calling convention, INTR-like shapes (single-block path)
    B, C = 8, 32
    query_logits = jax.random.normal(k1, (B, C), dtype=jnp.float32)
    labels = jax.random.randint(k2, (B,), 0, C, dtype=jnp.int32)

    outputs = {'query_logits': query_logits}
    targets = [{'image_label': labels[i:i + 1]} for i in range(B)]

    criterion = SetCriterion(args=None, model=None)
    losses = criterion(outputs, targets, model=None)
    loss = jax.block_until_ready(losses['CE_loss'])

    ref = ref_ce(query_logits, labels)
    assert jnp.allclose(loss, ref, rtol=1e-5, atol=1e-5), (loss, ref)

    # --- Check 2: bf16 logits (native-dtype DMA), forced multi-block grid with
    #              resident labels, ragged batch, and one ignore_index=-100 label
    B2, C2 = 20, 32
    logits2 = jax.random.normal(k3, (B2, C2), dtype=jnp.bfloat16)
    labels2 = jax.random.randint(k4, (B2,), 0, C2, dtype=jnp.int32)
    labels2 = labels2.at[3].set(-100)

    loss2 = jax.block_until_ready(
        cross_entropy_pallas(logits2, labels2, block_rows=16))
    ref2 = ref_ce(logits2, labels2)
    assert jnp.allclose(loss2, ref2, rtol=1e-4, atol=1e-4), (loss2, ref2)

    print("KERNEL_OK")
</pallas_src>

<mosaic_0001>
module attributes {stable_mosaic.version = 11 : i64} {
  func.func @_ce_single_block_kernel(%arg0: memref<8x32xf32, #tpu.memory_space<vmem>>, %arg1: memref<8x1xi32, #tpu.memory_space<vmem>>, %arg2: memref<1x1xf32, #tpu.memory_space<smem>>) attributes {dimension_semantics = [], scalar_prefetch = 0 : i64, scratch_operands = 0 : i64, tpu.core_type = #tpu.core_type<tc>} {
    %c0 = arith.constant 0 : index
    %c0_0 = arith.constant 0 : index
    %0 = vector.load %arg0[%c0, %c0_0] : memref<8x32xf32, #tpu.memory_space<vmem>>, vector<8x32xf32>
    %c0_1 = arith.constant 0 : index
    %c0_2 = arith.constant 0 : index
    %1 = vector.load %arg1[%c0_1, %c0_2] : memref<8x1xi32, #tpu.memory_space<vmem>>, vector<8x1xi32>
    %cst = arith.constant dense<0xFF800000> : vector<8xf32>
    %2 = vector.multi_reduction <maximumf>, %0, %cst [1] : vector<8x32xf32> to vector<8xf32>
    %3 = vector.shape_cast %2 : vector<8xf32> to vector<8x1xf32>
    %4 = vector.broadcast %3 : vector<8x1xf32> to vector<8x32xf32>
    %5 = arith.subf %0, %4 : vector<8x32xf32>
    %6 = math.exp %5 : vector<8x32xf32>
    %cst_3 = arith.constant dense<0.000000e+00> : vector<8xf32>
    %7 = vector.multi_reduction <add>, %6, %cst_3 [1] : vector<8x32xf32> to vector<8xf32>
    %8 = vector.shape_cast %7 : vector<8xf32> to vector<8x1xf32>
    %9 = math.log %8 : vector<8x1xf32>
    %10 = arith.addf %9, %3 : vector<8x1xf32>
    %11 = tpu.iota {dimensions = array<i32: 1>} : vector<8x32xi32>
    %12 = vector.broadcast %1 : vector<8x1xi32> to vector<8x32xi32>
    %13 = arith.cmpi eq, %11, %12 : vector<8x32xi32>
    %cst_4 = arith.constant 0.000000e+00 : f32
    %14 = vector.broadcast %cst_4 : f32 to vector<8x32xf32>
    %15 = arith.select %13, %0, %14 : vector<8x32xi1>, vector<8x32xf32>
    %cst_5 = arith.constant dense<0.000000e+00> : vector<8xf32>
    %16 = vector.multi_reduction <add>, %15, %cst_5 [1] : vector<8x32xf32> to vector<8xf32>
    %17 = vector.shape_cast %16 : vector<8xf32> to vector<8x1xf32>
    %c0_i32 = arith.constant 0 : i32
    %18 = vector.broadcast %c0_i32 : i32 to vector<8x1xi32>
    %19 = arith.cmpi sge, %1, %18 : vector<8x1xi32>
    %c32_i32 = arith.constant 32 : i32
    %20 = vector.broadcast %c32_i32 : i32 to vector<8x1xi32>
    %21 = arith.cmpi slt, %1, %20 : vector<8x1xi32>
    %22 = arith.andi %19, %21 : vector<8x1xi1>
    %23 = arith.subf %10, %17 : vector<8x1xf32>
    %cst_6 = arith.constant 0.000000e+00 : f32
    %24 = vector.broadcast %cst_6 : f32 to vector<8x1xf32>
    %25 = arith.select %22, %23, %24 : vector<8x1xi1>, vector<8x1xf32>
    %26 = vector.shape_cast %25 : vector<8x1xf32> to vector<1x8x1xf32>
    %cst_7 = arith.constant dense<0.000000e+00> : vector<1xf32>
    %27 = vector.multi_reduction <add>, %26, %cst_7 [1, 2] : vector<1x8x1xf32> to vector<1xf32>
    %28 = vector.shape_cast %27 : vector<1xf32> to vector<1x1x1xf32>
    %29 = vector.extract %28[0, 0, 0] : f32 from vector<1x1x1xf32>
    %30 = arith.extui %22 : vector<8x1xi1> to vector<8x1xi32>
    %31 = arith.sitofp %30 : vector<8x1xi32> to vector<8x1xf32>
    %32 = vector.shape_cast %31 : vector<8x1xf32> to vector<1x8x1xf32>
    %cst_8 = arith.constant dense<0.000000e+00> : vector<1xf32>
    %33 = vector.multi_reduction <add>, %32, %cst_8 [1, 2] : vector<1x8x1xf32> to vector<1xf32>
    %34 = vector.shape_cast %33 : vector<1xf32> to vector<1x1x1xf32>
    %35 = vector.extract %34[0, 0, 0] : f32 from vector<1x1x1xf32>
    %36 = arith.divf %29, %35 : f32
    %c0_9 = arith.constant 0 : index
    %c0_10 = arith.constant 0 : index
    %37 = memref.load %arg2[%c0_9, %c0_10] : memref<1x1xf32, #tpu.memory_space<smem>>
    memref.store %36, %arg2[%c0_9, %c0_10] : memref<1x1xf32, #tpu.memory_space<smem>>
    return
  }
}

</mosaic_0001>

<llo_original>
// kernel: tpu_custom_call.1
$region0: #{tpu_custom_call.1}
  #allocation0 [shape = 'u32[]', space=smem, size = 0x4, offset = 0x4, fixed_abs, tag = 'smem constant byte address 0x4 - core index']
  #allocation1 [shape = 'u32[144,128]{1,0:T(1,128)}', space=vmem, size = 0x12000, scoped, tag = 'internal scratch']
  %s0 = inlined_call_operand.vmem [shape: f32[8,32], index: 0, kind: input, shape index: {}]
  %s1 = inlined_call_operand.vmem [shape: s32[8,1], index: 1, kind: input, shape index: {}]
  %s2 = inlined_call_operand.hbm [shape: f32[1,1], index: 2, kind: output, shape index: {}]
  %s3 = sld [smem:[#allocation0]]
  $region18: #{tpu_custom_call.1} parent=0
    _
  %s5 = ssub.s32 1, %s3
  %s6 = scalar_select 0, %s5, %s3
  $region1: #{tpu_custom_call.1} parent=0
    #allocation2 [shape = 'u8[512]{0}', space=smem, size = 0x200, scoped, tag = 'output window, operand 0, single buffered']
    #allocation3 [shape = 's32[1]{0}', space=sflag, size = 0x4, scoped, tag = 'scoped memory for tpu_custom_call.1']
    %7 = vsyncpa [#allocation3], 0
    // Predicated region
    $region2: #{tpu_custom_call.1} parent=1 // pred_check
      _
    $region3: #{tpu_custom_call.1} parent=1 // pred_check_branch
      %9 = sbr.rel (0) target = $region5
    $region4: #{tpu_custom_call.1} parent=1 // pred_region
      _
    $region5: #{tpu_custom_call.1} parent=1 // pred_fallthru
      _
    // Predicated region
    $region6: #{tpu_custom_call.1} parent=1 // pred_check
      _
    $region7: #{tpu_custom_call.1} parent=1 // pred_check_branch
      %11 = sbr.rel (0) target = $region9
    $region8: #{tpu_custom_call.1} parent=1 // pred_region
      _
    $region9: #{tpu_custom_call.1} parent=1 // pred_fallthru
      _
    %v12 = vld [vmem:[%s0] sm:$0xff]
    %v13 = vld [vmem:[%s1] sm:$0xff]
    %vm14 = vcmask 261120
    %v15 = vsel %vm14, %v12, -inf
    %16 = vmax.xlane.f32.xlu0 %v15
    %v17 = vpop.xlane.xlu0 %16
    %v18 = vsub.f32 %v12, %v17
    %v19 = vmul.f32 %v18, 1.442695
    %v20 = vpow.pop %v19
    %v21 = vsel %vm14, %v20, 0.0
    %22 = vadd.xlane.f32.xlu0 %v21
    %v23 = vpop.xlane.xlu0 %22
    %v24 = vlog2.pop %v23
    %v25 = vmul.f32 %v24, 0.6931472
    %v26 = vadd.f32 %v25, %v17
    %v27 = vlaneseq
    %v28 = vand.u32 %v27, 127
    %29 = vset.pattern.permute.xlu0 0
    %30 = vperm.xlu0 %29, %v13
    %v31 = vpop.permute.xlu0 %30
    %vm32 = vcmp.eq.s32.totalorder %v28, %v31
    %v33 = vsel %vm32, %v12, 0.0
    %v34 = vsel %vm14, %v33, 0.0
    %35 = vadd.xlane.f32.xlu0 %v34
    %v36 = vpop.xlane.xlu0 %35
    %vm37 = vcmp.ge.s32.totalorder %v13, 0
    %vm38 = vcmp.lt.s32.totalorder %v13, 32
    %vm39 = vmand %vm37, %vm38
    %v40 = vsub.f32 %v26, %v36
    %v41 = vsel %vm39, %v40, 0.0
    %vm42 = vcmask 7168
    %v43 = vsel %vm42, %v41, 0.0
    %44 = vadd.xlane.f32.xlu0 %v43
    %v45 = vpop.xlane.xlu0 %44
    %v46 = vrot.slane %v45, 4
    %v47 = vadd.f32 %v45, %v46
    %v48 = vrot.slane %v47, 2
    %v49 = vadd.f32 %v47, %v48
    %v50 = vrot.slane %v49, 1
    %v51 = vadd.f32 %v49, %v50
    %s52 = vtos %v51
    %v53 = vsel %vm39, 1, 0
    %v54 = vcvt.s32.f32 %v53
    %v55 = vsel %vm42, %v54, 0.0
    %56 = vadd.xlane.f32.xlu0 %v55
    %v57 = vpop.xlane.xlu0 %56
    %v58 = vrot.slane %v57, 4
    %v59 = vadd.f32 %v57, %v58
    %v60 = vrot.slane %v59, 2
    %v61 = vadd.f32 %v59, %v60
    %v62 = vrot.slane %v61, 1
    %v63 = vadd.f32 %v61, %v62
    %s64 = vtos %v63
    %v65 = vstv %s64
    %v66 = vrcp.pop %v65
    %s67 = vtos %v66
    %s68 = smul.f32 %s52, %s67
    %s69 = scalar_lea.smem [#allocation2], 0
    %70 = sst [smem:[%s69]] %s68
    // Predicated region
    $region10: #{tpu_custom_call.1} parent=1 // pred_check
      _
    $region11: #{tpu_custom_call.1} parent=1 // pred_check_branch
      %72 = sbr.rel (0) target = $region13
    $region12: #{tpu_custom_call.1} parent=1 // pred_region
      %s74 = ssub.s32 16, 16
      %75 = vsyncadd [#allocation3], %s74
      %78 = dma.smem_to_hbm [#allocation2], 16, %s2, [#allocation3]
    $region13: #{tpu_custom_call.1} parent=1 // pred_fallthru
      _
    // Predicated region
    $region14: #{tpu_custom_call.1} parent=1 // pred_check
      _
    $region15: #{tpu_custom_call.1} parent=1 // pred_check_branch
      %80 = sbr.rel (0) target = $region17
    $region16: #{tpu_custom_call.1} parent=1 // pred_region
      %81 = dma.done [#allocation3], 16
    $region17: #{tpu_custom_call.1} parent=1 // pred_fallthru
      _
    %82 = sfence
    %83 = vsyncpa [#allocation3], 1

</llo_original>
